<compile_context>
chip_gen: v7x
topology: tpu7x:2x2x1
jax: 0.10.0
libtpu: 0.0.40
codegen_flags: <defaults>
</compile_context>

<pallas_src>
import functools

import jax
import jax.numpy as jnp
from jax.experimental import pallas as pl
from jax.experimental.pallas import tpu as pltpu


def _round_up(a: int, b: int) -> int:
    return ((a + b - 1) // b) * b


def _round_down(a: int, b: int) -> int:
    return (a // b) * b


# ----------------------------------------------------------------------------
# Kernels
# ----------------------------------------------------------------------------
def _ffn_kernel_resident(x_ref, w1_ref, b1_ref, w2_ref, b2_ref, gamma_ref,
                         beta_ref, o_ref, *, eps):
    """Weights fully VMEM-resident: single k step, no accumulator scratch."""
    x = x_ref[...]
    # First pointwise conv (d_model -> dff) + bias + ReLU, f32 accumulation.
    h = jnp.dot(x.astype(w1_ref.dtype), w1_ref[...],
                preferred_element_type=jnp.float32)
    h = jnp.maximum(h + b1_ref[...].astype(jnp.float32), 0.0)
    # Second pointwise conv (dff -> d_model).
    y = jnp.dot(h.astype(w2_ref.dtype), w2_ref[...],
                preferred_element_type=jnp.float32)
    # Residual + LayerNorm (one-pass stats, all f32).
    z = x.astype(jnp.float32) + y + b2_ref[...].astype(jnp.float32)
    mean = jnp.mean(z, axis=-1, keepdims=True)
    var = jnp.mean(z * z, axis=-1, keepdims=True) - mean * mean  # biased, as nn.LayerNorm
    inv = jax.lax.rsqrt(var + eps)
    out = ((z - mean) * inv * gamma_ref[...].astype(jnp.float32)
           + beta_ref[...].astype(jnp.float32))
    o_ref[...] = out.astype(o_ref.dtype)


def _ffn_kernel_tiled(x_ref, w1_ref, b1_ref, w2_ref, b2_ref, gamma_ref,
                      beta_ref, o_ref, acc_ref, *, eps):
    """dff is a reduction grid axis; f32 VMEM accumulator; epilogue on last step."""
    k = pl.program_id(1)

    @pl.when(k == 0)
    def _():
        acc_ref[...] = jnp.zeros_like(acc_ref)

    h = jnp.dot(x_ref[...].astype(w1_ref.dtype), w1_ref[...],
                preferred_element_type=jnp.float32)
    h = jnp.maximum(h + b1_ref[...].astype(jnp.float32), 0.0)
    acc_ref[...] += jnp.dot(h.astype(w2_ref.dtype), w2_ref[...],
                            preferred_element_type=jnp.float32)

    @pl.when(k == pl.num_programs(1) - 1)
    def _():
        z = (x_ref[...].astype(jnp.float32) + acc_ref[...]
             + b2_ref[...].astype(jnp.float32))
        mean = jnp.mean(z, axis=-1, keepdims=True)
        var = jnp.mean(z * z, axis=-1, keepdims=True) - mean * mean
        inv = jax.lax.rsqrt(var + eps)
        out = ((z - mean) * inv * gamma_ref[...].astype(jnp.float32)
               + beta_ref[...].astype(jnp.float32))
        o_ref[...] = out.astype(o_ref.dtype)


# ----------------------------------------------------------------------------
# Wrapper
# ----------------------------------------------------------------------------
def positionalwise_feed_forward(x, w1, b1, w2, b2, gamma, beta, *,
                                eps=1e-5, tm=512, tk=1024,
                                weight_resident=None):
    """x: (B, L, d_model). w1: (d_model, dff), w2: (dff, d_model).

    Weights may be bf16 for full MXU rate (x is cast to the weight dtype in the
    kernel); accumulation and LayerNorm stay f32.  weight_resident: None = auto
    (fit-in-VMEM check), False = force the dff-tiled reduction path, True =
    force residency (caller guarantees the weights fit).
    """
    B, L, d_model = x.shape
    dff = w1.shape[1]
    M = B * L

    x_isz = jnp.dtype(x.dtype).itemsize
    w_isz = jnp.dtype(w1.dtype).itemsize

    # ---- generation-aware VMEM budget (leave headroom for Mosaic scratch) ----
    try:
        vmem_cap = int(pltpu.get_tpu_info().vmem_capacity_bytes)
    except Exception:
        vmem_cap = 64 * 1024 * 1024        # safe on every generation
    budget = min(int(vmem_cap * 0.8), vmem_cap - 8 * 1024 * 1024)

    # ---- row tiling: large tm (clamped for small M, sublane-aligned) ---------
    sublane = 8 * max(1, 4 // x_isz)       # 8 f32 / 16 bf16 / 32 i8
    tm_req = max(sublane, min(_round_up(tm, sublane), _round_up(M, sublane)))

    # ---- dff padding: only to a multiple of 128 ------------------------------
    dff_pad = dff if dff % 128 == 0 else _round_up(dff, 128)

    def vmem_est(tm_, tk_, resident):
        est = 2 * tm_ * d_model * x_isz          # x tile (double-buffered)
        est += 2 * tm_ * d_model * x_isz         # out tile
        est += 2 * d_model * tk_ * w_isz         # w1 tile(s)
        est += 2 * tk_ * d_model * w_isz         # w2 tile(s)
        est += 2 * 8 * (tk_ + 3 * d_model) * 4   # biases / gamma / beta (padded rows)
        est += tm_ * tk_ * 4 + tm_ * tk_ * w_isz  # hidden act f32 + weight-dtype copy
        if not resident:
            est += tm_ * d_model * 4             # f32 accumulator scratch
        return est

    # ---- choose path: weight-resident (1 k step) vs. dff-tiled reduction -----
    resident = False
    tm_eff = tm_req
    if weight_resident is True:
        resident = True
    elif weight_resident is not False:
        t = tm_req
        while True:
            if vmem_est(t, dff_pad, True) <= budget:
                resident, tm_eff = True, t
                break
            if t <= sublane:
                break
            t = max(sublane, _round_down(max(t // 2, sublane), sublane))

    if resident:
        tk_eff = dff_pad
        n_k = 1
    else:
        dff_base = dff_pad
        tk_target = max(128, min(_round_up(tk, 128), dff_base))
        n_k = -(-dff_base // tk_target)
        tk_eff = _round_up(-(-dff_base // n_k), 128)
        dff_pad = tk_eff * n_k
        # Shrink tm first, then tk, until the tiles fit the VMEM budget.
        while vmem_est(tm_eff, tk_eff, False) > budget and tm_eff > sublane:
            tm_eff = max(sublane, _round_down(max(tm_eff // 2, sublane), sublane))
        while vmem_est(tm_eff, tk_eff, False) > budget and tk_eff > 128:
            n_k *= 2
            tk_eff = _round_up(-(-dff_base // n_k), 128)
            dff_pad = tk_eff * n_k

    M_pad = _round_up(M, tm_eff)
    n_rows = M_pad // tm_eff

    # ---- pad operands (exact: relu(0)=0, zero w2 rows; padded rows sliced off)
    x2d = x.reshape(M, d_model)
    if M_pad > M:
        x2d = jnp.pad(x2d, ((0, M_pad - M), (0, 0)))
    if dff_pad > dff:
        w1 = jnp.pad(w1, ((0, 0), (0, dff_pad - dff)))
        b1 = jnp.pad(b1, (0, dff_pad - dff))
        w2 = jnp.pad(w2, ((0, dff_pad - dff), (0, 0)))

    b1_2d = b1.reshape(1, dff_pad)
    b2_2d = b2.reshape(1, d_model)
    gamma_2d = gamma.reshape(1, d_model)
    beta_2d = beta.reshape(1, d_model)

    # ---- advisory cost hint ---------------------------------------------------
    weight_bytes = (w1.size + w2.size) * w_isz
    flops = 4 * M_pad * d_model * dff_pad + 12 * M_pad * d_model
    transcendentals = M_pad                              # one rsqrt per row
    bytes_accessed = (2 * M_pad * d_model * x_isz
                      + (1 if resident else n_rows) * weight_bytes
                      + (dff_pad + 3 * d_model) * 4)
    cost = pl.CostEstimate(flops=flops, transcendentals=transcendentals,
                           bytes_accessed=bytes_accessed)

    if resident:
        out = pl.pallas_call(
            functools.partial(_ffn_kernel_resident, eps=eps),
            out_shape=jax.ShapeDtypeStruct((M_pad, d_model), x.dtype),
            grid_spec=pltpu.PrefetchScalarGridSpec(
                num_scalar_prefetch=0,
                grid=(n_rows,),
                in_specs=[
                    pl.BlockSpec((tm_eff, d_model), lambda i: (i, 0)),   # x rows
                    pl.BlockSpec((d_model, dff_pad), lambda i: (0, 0)),  # w1 (resident)
                    pl.BlockSpec((1, dff_pad), lambda i: (0, 0)),        # b1
                    pl.BlockSpec((dff_pad, d_model), lambda i: (0, 0)),  # w2 (resident)
                    pl.BlockSpec((1, d_model), lambda i: (0, 0)),        # b2
                    pl.BlockSpec((1, d_model), lambda i: (0, 0)),        # gamma
                    pl.BlockSpec((1, d_model), lambda i: (0, 0)),        # beta
                ],
                out_specs=pl.BlockSpec((tm_eff, d_model), lambda i: (i, 0)),
            ),
            compiler_params=pltpu.CompilerParams(
                dimension_semantics=("parallel",),
                vmem_limit_bytes=budget),
            cost_estimate=cost,
        )(x2d, w1, b1_2d, w2, b2_2d, gamma_2d, beta_2d)
    else:
        out = pl.pallas_call(
            functools.partial(_ffn_kernel_tiled, eps=eps),
            out_shape=jax.ShapeDtypeStruct((M_pad, d_model), x.dtype),
            grid_spec=pltpu.PrefetchScalarGridSpec(
                num_scalar_prefetch=0,
                grid=(n_rows, n_k),
                in_specs=[
                    pl.BlockSpec((tm_eff, d_model), lambda i, k: (i, 0)),  # x rows
                    pl.BlockSpec((d_model, tk_eff), lambda i, k: (0, k)),  # w1 dff-tile
                    pl.BlockSpec((1, tk_eff), lambda i, k: (0, k)),        # b1 dff-tile
                    pl.BlockSpec((tk_eff, d_model), lambda i, k: (k, 0)),  # w2 dff-tile
                    pl.BlockSpec((1, d_model), lambda i, k: (0, 0)),       # b2
                    pl.BlockSpec((1, d_model), lambda i, k: (0, 0)),       # gamma
                    pl.BlockSpec((1, d_model), lambda i, k: (0, 0)),       # beta
                ],
                out_specs=pl.BlockSpec((tm_eff, d_model), lambda i, k: (i, 0)),
                scratch_shapes=[pltpu.VMEM((tm_eff, d_model), jnp.float32)],
            ),
            compiler_params=pltpu.CompilerParams(
                dimension_semantics=("parallel", "arbitrary"),
                vmem_limit_bytes=budget),
            cost_estimate=cost,
        )(x2d, w1, b1_2d, w2, b2_2d, gamma_2d, beta_2d)

    return out[:M].reshape(B, L, d_model)


# ----------------------------------------------------------------------------
# Reference + test harness
# ----------------------------------------------------------------------------
def _reference(x, w1, b1, w2, b2, gamma, beta, eps=1e-5):
    x = x.astype(jnp.float32)
    h = jnp.maximum(jnp.einsum("bld,df->blf", x, w1.astype(jnp.float32)) + b1, 0.0)
    y = jnp.einsum("blf,fd->bld", h, w2.astype(jnp.float32)) + b2
    z = x + y
    mean = jnp.mean(z, axis=-1, keepdims=True)
    var = jnp.mean((z - mean) ** 2, axis=-1, keepdims=True)
    return (z - mean) * jax.lax.rsqrt(var + eps) * gamma + beta


def _make_params(key, d_model, dff):
    kw1, kb1, kw2, kb2 = jax.random.split(key, 4)
    # Conv1d weights in PyTorch are (out_ch, in_ch, 1); stored here transposed
    # as (in_ch, out_ch) for row-major matmul.
    w1 = jax.random.normal(kw1, (d_model, dff), dtype=jnp.float32) * 0.05
    b1 = jax.random.normal(kb1, (dff,), dtype=jnp.float32) * 0.05
    w2 = jax.random.normal(kw2, (dff, d_model), dtype=jnp.float32) * 0.05
    b2 = jax.random.normal(kb2, (d_model,), dtype=jnp.float32) * 0.05
    gamma = jnp.ones((d_model,), dtype=jnp.float32)
    beta = jnp.zeros((d_model,), dtype=jnp.float32)
    return w1, b1, w2, b2, gamma, beta


if __name__ == "__main__":
    key = jax.random.PRNGKey(0)
    k0, k1, k2, k3, k4, k5 = jax.random.split(key, 6)

    # --- test 1: small shapes consistent with the module (weight-resident path)
    B, L, d_model, dff = 2, 8, 32, 64
    x = jax.random.normal(k0, (B, L, d_model), dtype=jnp.float32)
    p1 = _make_params(k1, d_model, dff)
    out = jax.block_until_ready(positionalwise_feed_forward(x, *p1))
    ref = _reference(x, *p1)
    assert out.shape == (B, L, d_model)
    assert jnp.allclose(out, ref, atol=1e-4, rtol=1e-4)

    # --- test 2: force the dff-tiled reduction path + row/dff padding ----------
    B2, L2, dm2, dff2 = 2, 23, 128, 320            # M=46 -> padded; dff 320 -> 384
    x2 = jax.random.normal(k2, (B2, L2, dm2), dtype=jnp.float32)
    p2 = _make_params(k3, dm2, dff2)
    out2 = jax.block_until_ready(positionalwise_feed_forward(
        x2, *p2, tm=16, tk=128, weight_resident=False))
    ref2 = _reference(x2, *p2)
    assert out2.shape == (B2, L2, dm2)
    assert jnp.allclose(out2, ref2, atol=2e-3, rtol=2e-3)

    # --- test 3: bf16 weights (fast MXU mode), f32 activations / LayerNorm -----
    B3, L3, dm3, dff3 = 2, 16, 128, 256
    x3 = jax.random.normal(k4, (B3, L3, dm3), dtype=jnp.float32)
    w1f, b1f, w2f, b2f, gf, bf = _make_params(k5, dm3, dff3)
    out3 = jax.block_until_ready(positionalwise_feed_forward(
        x3, w1f.astype(jnp.bfloat16), b1f, w2f.astype(jnp.bfloat16), b2f, gf, bf))
    ref3 = _reference(x3, w1f, b1f, w2f, b2f, gf, bf)
    assert out3.shape == (B3, L3, dm3)
    assert jnp.allclose(out3, ref3, atol=3e-2, rtol=3e-2)

    # TODO(synk): nn.Dropout with p > 0 is not implemented (module default p=0.0
    # makes it an identity); would need pltpu.prng_* for stochastic masking.
    print("KERNEL_OK")
</pallas_src>

<mosaic_0001>
module attributes {stable_mosaic.version = 11 : i64} {
  func.func @_ffn_kernel_resident(%arg0: i32, %arg1: memref<16x32xf32, #tpu.memory_space<vmem>>, %arg2: memref<32x128xf32, #tpu.memory_space<vmem>>, %arg3: memref<1x128xf32, #tpu.memory_space<vmem>>, %arg4: memref<128x32xf32, #tpu.memory_space<vmem>>, %arg5: memref<1x32xf32, #tpu.memory_space<vmem>>, %arg6: memref<1x32xf32, #tpu.memory_space<vmem>>, %arg7: memref<1x32xf32, #tpu.memory_space<vmem>>, %arg8: memref<16x32xf32, #tpu.memory_space<vmem>>) attributes {dimension_semantics = [#tpu.dimension_semantics<parallel>], iteration_bounds = array<i64: 1>, scalar_prefetch = 0 : i64, scratch_operands = 0 : i64, tpu.core_type = #tpu.core_type<tc>, window_params = [{transform_indices = @transform_0, window_bounds = array<i64: 16, 32>}, {pipeline_mode = #tpu.pipeline_mode<synchronous>, transform_indices = @transform_1, window_bounds = array<i64: 32, 128>}, {pipeline_mode = #tpu.pipeline_mode<synchronous>, transform_indices = @transform_2, window_bounds = array<i64: 1, 128>}, {pipeline_mode = #tpu.pipeline_mode<synchronous>, transform_indices = @transform_3, window_bounds = array<i64: 128, 32>}, {pipeline_mode = #tpu.pipeline_mode<synchronous>, transform_indices = @transform_4, window_bounds = array<i64: 1, 32>}, {pipeline_mode = #tpu.pipeline_mode<synchronous>, transform_indices = @transform_5, window_bounds = array<i64: 1, 32>}, {pipeline_mode = #tpu.pipeline_mode<synchronous>, transform_indices = @transform_6, window_bounds = array<i64: 1, 32>}, {transform_indices = @transform_7, window_bounds = array<i64: 16, 32>}]} {
    %c0 = arith.constant 0 : index
    %c0_0 = arith.constant 0 : index
    %0 = vector.load %arg1[%c0, %c0_0] : memref<16x32xf32, #tpu.memory_space<vmem>>, vector<16x32xf32>
    %c0_1 = arith.constant 0 : index
    %c0_2 = arith.constant 0 : index
    %1 = vector.load %arg2[%c0_1, %c0_2] : memref<32x128xf32, #tpu.memory_space<vmem>>, vector<32x128xf32>
    %cst = arith.constant dense<0.000000e+00> : vector<16x128xf32>
    %2 = tpu.matmul %0, %1, %cst {dimension_numbers = #tpu.dot_dimension_numbers<[1], [0], [0], [1], [0, 0, 1, 1], [], []>} : vector<16x32xf32>, vector<32x128xf32>, vector<16x128xf32> -> vector<16x128xf32>
    %c0_3 = arith.constant 0 : index
    %c0_4 = arith.constant 0 : index
    %3 = vector.load %arg3[%c0_3, %c0_4] : memref<1x128xf32, #tpu.memory_space<vmem>>, vector<1x128xf32>
    %4 = vector.broadcast %3 : vector<1x128xf32> to vector<16x128xf32>
    %5 = arith.addf %2, %4 : vector<16x128xf32>
    %cst_5 = arith.constant 0.000000e+00 : f32
    %6 = vector.broadcast %cst_5 : f32 to vector<16x128xf32>
    %7 = arith.maximumf %5, %6 : vector<16x128xf32>
    %c0_6 = arith.constant 0 : index
    %c0_7 = arith.constant 0 : index
    %8 = vector.load %arg4[%c0_6, %c0_7] : memref<128x32xf32, #tpu.memory_space<vmem>>, vector<128x32xf32>
    %cst_8 = arith.constant dense<0.000000e+00> : vector<16x32xf32>
    %9 = tpu.matmul %7, %8, %cst_8 {dimension_numbers = #tpu.dot_dimension_numbers<[1], [0], [0], [1], [0, 0, 1, 1], [], []>} : vector<16x128xf32>, vector<128x32xf32>, vector<16x32xf32> -> vector<16x32xf32>
    %10 = arith.addf %0, %9 : vector<16x32xf32>
    %c0_9 = arith.constant 0 : index
    %c0_10 = arith.constant 0 : index
    %11 = vector.load %arg5[%c0_9, %c0_10] : memref<1x32xf32, #tpu.memory_space<vmem>>, vector<1x32xf32>
    %12 = vector.broadcast %11 : vector<1x32xf32> to vector<16x32xf32>
    %13 = arith.addf %10, %12 : vector<16x32xf32>
    %cst_11 = arith.constant dense<0.000000e+00> : vector<16xf32>
    %14 = vector.multi_reduction <add>, %13, %cst_11 [1] : vector<16x32xf32> to vector<16xf32>
    %15 = vector.shape_cast %14 : vector<16xf32> to vector<16x1xf32>
    %cst_12 = arith.constant 3.200000e+01 : f32
    %16 = vector.broadcast %cst_12 : f32 to vector<16x1xf32>
    %17 = arith.divf %15, %16 : vector<16x1xf32>
    %18 = arith.mulf %13, %13 : vector<16x32xf32>
    %cst_13 = arith.constant dense<0.000000e+00> : vector<16xf32>
    %19 = vector.multi_reduction <add>, %18, %cst_13 [1] : vector<16x32xf32> to vector<16xf32>
    %20 = vector.shape_cast %19 : vector<16xf32> to vector<16x1xf32>
    %cst_14 = arith.constant 3.200000e+01 : f32
    %21 = vector.broadcast %cst_14 : f32 to vector<16x1xf32>
    %22 = arith.divf %20, %21 : vector<16x1xf32>
    %23 = arith.mulf %17, %17 : vector<16x1xf32>
    %24 = arith.subf %22, %23 : vector<16x1xf32>
    %cst_15 = arith.constant 9.99999974E-6 : f32
    %25 = vector.broadcast %cst_15 : f32 to vector<16x1xf32>
    %26 = arith.addf %24, %25 : vector<16x1xf32>
    %27 = math.rsqrt %26 : vector<16x1xf32>
    %28 = vector.broadcast %17 : vector<16x1xf32> to vector<16x32xf32>
    %29 = arith.subf %13, %28 : vector<16x32xf32>
    %30 = vector.broadcast %27 : vector<16x1xf32> to vector<16x32xf32>
    %31 = arith.mulf %29, %30 : vector<16x32xf32>
    %c0_16 = arith.constant 0 : index
    %c0_17 = arith.constant 0 : index
    %32 = vector.load %arg6[%c0_16, %c0_17] : memref<1x32xf32, #tpu.memory_space<vmem>>, vector<1x32xf32>
    %33 = vector.broadcast %32 : vector<1x32xf32> to vector<16x32xf32>
    %34 = arith.mulf %31, %33 : vector<16x32xf32>
    %c0_18 = arith.constant 0 : index
    %c0_19 = arith.constant 0 : index
    %35 = vector.load %arg7[%c0_18, %c0_19] : memref<1x32xf32, #tpu.memory_space<vmem>>, vector<1x32xf32>
    %36 = vector.broadcast %35 : vector<1x32xf32> to vector<16x32xf32>
    %37 = arith.addf %34, %36 : vector<16x32xf32>
    %c0_20 = arith.constant 0 : index
    %c0_21 = arith.constant 0 : index
    %38 = vector.load %arg8[%c0_20, %c0_21] : memref<16x32xf32, #tpu.memory_space<vmem>>, vector<16x32xf32>
    tpu.vector_store %arg8[%c0_20, %c0_21], %37 {strides = array<i32>} : memref<16x32xf32, #tpu.memory_space<vmem>>, vector<16x32xf32>,
    return
  }
  func.func @transform_0(%arg0: i32) -> (i32, i32) {
    %c0_i32 = arith.constant 0 : i32
    %c0_i32_0 = arith.constant 0 : i32
    return %arg0, %c0_i32 : i32, i32
  }
  func.func @transform_1(%arg0: i32) -> (i32, i32) {
    %c0_i32 = arith.constant 0 : i32
    %c0_i32_0 = arith.constant 0 : i32
    %c0_i32_1 = arith.constant 0 : i32
    return %c0_i32, %c0_i32_0 : i32, i32
  }
  func.func @transform_2(%arg0: i32) -> (i32, i32) {
    %c0_i32 = arith.constant 0 : i32
    %c0_i32_0 = arith.constant 0 : i32
    %c0_i32_1 = arith.constant 0 : i32
    return %c0_i32, %c0_i32_0 : i32, i32
  }
  func.func @transform_3(%arg0: i32) -> (i32, i32) {
    %c0_i32 = arith.constant 0 : i32
    %c0_i32_0 = arith.constant 0 : i32
    %c0_i32_1 = arith.constant 0 : i32
    return %c0_i32, %c0_i32_0 : i32, i32
  }
  func.func @transform_4(%arg0: i32) -> (i32, i32) {
    %c0_i32 = arith.constant 0 : i32
    %c0_i32_0 = arith.constant 0 : i32
    %c0_i32_1 = arith.constant 0 : i32
    return %c0_i32, %c0_i32_0 : i32, i32
  }
  func.func @transform_5(%arg0: i32) -> (i32, i32) {
    %c0_i32 = arith.constant 0 : i32
    %c0_i32_0 = arith.constant 0 : i32
    %c0_i32_1 = arith.constant 0 : i32
    return %c0_i32, %c0_i32_0 : i32, i32
  }
  func.func @transform_6(%arg0: i32) -> (i32, i32) {
    %c0_i32 = arith.constant 0 : i32
    %c0_i32_0 = arith.constant 0 : i32
    %c0_i32_1 = arith.constant 0 : i32
    return %c0_i32, %c0_i32_0 : i32, i32
  }
  func.func @transform_7(%arg0: i32) -> (i32, i32) {
    %c0_i32 = arith.constant 0 : i32
    %c0_i32_0 = arith.constant 0 : i32
    return %arg0, %c0_i32 : i32, i32
  }
}

</mosaic_0001>

<llo_original>
// kernel: tpu_custom_call.1
$region0: #{tpu_custom_call.1}
  #allocation0 [shape = 'u32[]', space=smem, size = 0x4, offset = 0x4, fixed_abs, tag = 'smem constant byte address 0x4 - core index']
  #allocation1 [shape = 'u32[144,128]{1,0:T(1,128)}', space=vmem, size = 0x12000, scoped, tag = 'internal scratch']
  %s0 = inlined_call_operand.vmem [shape: f32[16,32], index: 0, kind: input, shape index: {}]
  %s1 = inlined_call_operand.vmem [shape: f32[32,128], index: 1, kind: input, shape index: {}]
  %s2 = inlined_call_operand.vmem [shape: f32[1,128], index: 2, kind: input, shape index: {}]
  %s3 = inlined_call_operand.vmem [shape: f32[128,32], index: 3, kind: input, shape index: {}]
  %s4 = inlined_call_operand.vmem [shape: f32[1,32], index: 4, kind: input, shape index: {}]
  %s5 = inlined_call_operand.vmem [shape: f32[1,32], index: 5, kind: input, shape index: {}]
  %s6 = inlined_call_operand.vmem [shape: f32[1,32], index: 6, kind: input, shape index: {}]
  %s7 = inlined_call_operand.hbm [shape: f32[16,32], index: 7, kind: output, shape index: {}]
  %s8 = sld [smem:[#allocation0]]
  $region38: #{tpu_custom_call.1} parent=0
    _
  %s10 = ssub.s32 1, %s8
  %s11 = scalar_select 0, %s10, %s8
  $region1: #{tpu_custom_call.1} parent=0
    #allocation2 [shape = 'u8[8192]{0}', space=vmem, size = 0x2000, scoped, tag = 'output window, operand 0, single buffered']
    #allocation3 [shape = 's32[1]{0}', space=sflag, size = 0x4, scoped, tag = 'scoped memory for tpu_custom_call.1']
    %12 = vsyncpa [#allocation3], 0
    // Predicated region
    $region2: #{tpu_custom_call.1} parent=1 // pred_check
      _
    $region3: #{tpu_custom_call.1} parent=1 // pred_check_branch
      %14 = sbr.rel (0) target = $region5
    $region4: #{tpu_custom_call.1} parent=1 // pred_region
      _
    $region5: #{tpu_custom_call.1} parent=1 // pred_fallthru
      _
    // Predicated region
    $region6: #{tpu_custom_call.1} parent=1 // pred_check
      _
    $region7: #{tpu_custom_call.1} parent=1 // pred_check_branch
      %16 = sbr.rel (0) target = $region9
    $region8: #{tpu_custom_call.1} parent=1 // pred_region
      _
    $region9: #{tpu_custom_call.1} parent=1 // pred_fallthru
      _
    // Predicated region
    $region10: #{tpu_custom_call.1} parent=1 // pred_check
      _
    $region11: #{tpu_custom_call.1} parent=1 // pred_check_branch
      %18 = sbr.rel (0) target = $region13
    $region12: #{tpu_custom_call.1} parent=1 // pred_region
      _
    $region13: #{tpu_custom_call.1} parent=1 // pred_fallthru
      _
    // Predicated region
    $region14: #{tpu_custom_call.1} parent=1 // pred_check
      _
    $region15: #{tpu_custom_call.1} parent=1 // pred_check_branch
      %20 = sbr.rel (0) target = $region17
    $region16: #{tpu_custom_call.1} parent=1 // pred_region
      _
    $region17: #{tpu_custom_call.1} parent=1 // pred_fallthru
      _
    // Predicated region
    $region18: #{tpu_custom_call.1} parent=1 // pred_check
      _
    $region19: #{tpu_custom_call.1} parent=1 // pred_check_branch
      %22 = sbr.rel (0) target = $region21
    $region20: #{tpu_custom_call.1} parent=1 // pred_region
      _
    $region21: #{tpu_custom_call.1} parent=1 // pred_fallthru
      _
    // Predicated region
    $region22: #{tpu_custom_call.1} parent=1 // pred_check
      _
    $region23: #{tpu_custom_call.1} parent=1 // pred_check_branch
      %24 = sbr.rel (0) target = $region25
    $region24: #{tpu_custom_call.1} parent=1 // pred_region
      _
    $region25: #{tpu_custom_call.1} parent=1 // pred_fallthru
      _
    // Predicated region
    $region26: #{tpu_custom_call.1} parent=1 // pred_check
      _
    $region27: #{tpu_custom_call.1} parent=1 // pred_check_branch
      %26 = sbr.rel (0) target = $region29
    $region28: #{tpu_custom_call.1} parent=1 // pred_region
      _
    $region29: #{tpu_custom_call.1} parent=1 // pred_fallthru
      _
    %v27 = vld [vmem:[%s0] sm:$0xff]
    %v28 = vld [vmem:[%s0 + $0x8] sm:$0xff]
    %v29 = vld [vmem:[%s1] sm:$0xff]
    %v30 = vld [vmem:[%s1 + $0x8] sm:$0xff]
    %v31 = vld [vmem:[%s1 + $0x10] sm:$0xff]
    %v32 = vld [vmem:[%s1 + $0x18] sm:$0xff]
    %v33 = vld [vmem:[%s2] sm:$0x1]
    %v35 = vlaneseq
    %v36 = vshrl.u32 %v35, 7
    %v37 = vsub.s32 0, %v36
    %v38 = vrot.slane %v33, %v37
    %vm40 = vcmask 261120
    %v42 = vsel %vm40, %v27, 0
    %v45 = vsel %vm40, %v28, 0
    %47 = vmatprep.subr.mxu0 0.0
    %48 = vmatpush1.msra.mxu0 %v29
    %49 = vmatprep.subr.mxu0 0.0
    %50 = vmatpush1.msra.mxu0 %v30
    %51 = vmatprep.subr.mxu0 0.0
    %52 = vmatpush1.msra.mxu0 %v31
    %53 = vmatprep.subr.mxu0 0.0
    %54 = vmatpush1.msra.mxu0 %v32
    %55 = vmatprep.subr.mxu0 0.0
    %56 = vmatpush1.msra.mxu0 0.0
    %57 = vmatprep.subr.mxu0 0.0
    %58 = vmatpush1.msra.mxu0 0.0
    %59 = vmatprep.subr.mxu0 0.0
    %60 = vmatpush1.msra.mxu0 0.0
    %61 = vmatprep.subr.mxu0 0.0
    %62 = vmatpush1.msra.mxu0 0.0
    %63 = vmatprep.subr.mxu0 0.0
    %64 = vmatpush1.msra.mxu0 0.0
    %65 = vmatprep.subr.mxu0 0.0
    %66 = vmatpush1.msra.mxu0 0.0
    %67 = vmatprep.subr.mxu0 0.0
    %68 = vmatpush1.msra.mxu0 0.0
    %69 = vmatprep.subr.mxu0 0.0
    %70 = vmatpush1.msra.mxu0 0.0
    %71 = vmatprep.subr.mxu0 0.0
    %72 = vmatpush1.msra.mxu0 0.0
    %73 = vmatprep.subr.mxu0 0.0
    %74 = vmatpush1.msra.mxu0 0.0
    %75 = vmatprep.subr.mxu0 0.0
    %76 = vmatpush1.msra.mxu0 0.0
    %77 = vmatprep.subr.mxu0 0.0
    %78 = vmatpush1.msra.mxu0 0.0
    %79 = vmatprep.subr.mxu0 0.0
    %80 = vmatpush1.msra.mxu0 0.0
    %81 = vmatprep.subr.mxu0 0.0
    %82 = vmatpush1.msra.mxu0 0.0
    %83 = vmatprep.subr.mxu0 0.0
    %84 = vmatpush1.msra.mxu0 0.0
    %85 = vmatprep.subr.mxu0 0.0
    %86 = vmatpush1.msra.mxu0 0.0
    %87 = vmatprep.subr.mxu0 0.0
    %88 = vmatpush1.msra.mxu0 0.0
    %89 = vmatprep.subr.mxu0 0.0
    %90 = vmatpush1.msra.mxu0 0.0
    %91 = vmatprep.subr.mxu0 0.0
    %92 = vmatpush1.msra.mxu0 0.0
    %93 = vmatprep.subr.mxu0 0.0
    %94 = vmatpush1.msra.mxu0 0.0
    %95 = vmatprep.subr.mxu0 0.0
    %96 = vmatpush1.msra.mxu0 0.0
    %97 = vmatprep.subr.mxu0 0.0
    %98 = vmatpush1.msra.mxu0 0.0
    %99 = vmatprep.subr.mxu0 0.0
    %100 = vmatpush1.msra.mxu0 0.0
    %101 = vmatprep.subr.mxu0 0.0
    %102 = vmatpush1.msra.mxu0 0.0
    %103 = vmatprep.subr.mxu0 0.0
    %104 = vmatpush1.msra.mxu0 0.0
    %105 = vmatprep.subr.mxu0 0.0
    %106 = vmatpush1.msra.mxu0 0.0
    %107 = vmatprep.subr.mxu0 0.0
    %108 = vmatpush1.msra.mxu0 0.0
    %109 = vmatprep.subr.mxu0 0.0
    %110 = vmatpush1.msra.mxu0 0.0
    %111 = vmatprep.mubr.f32.mxu0 0.0
    %112 = vmatmul.mubr.f32.gmra.mrb[0].mxu0 %v42
    %v113 = vpop.f32.mrb[0].mxu0
    %v114 = vadd.f32 %v38, %v113
    %v115 = vpop.f32.mrb[0].mxu0
    %116 = vmatprep.mubr.f32.mxu0 0.0
    %117 = vmatmul.mubr.f32.gmra.mrb[0].mxu0 %v45
    %v118 = vpop.f32.mrb[0].mxu0
    %v119 = vadd.f32 %v38, %v118
    %v120 = vpop.f32.mrb[0].mxu0
    %121 = vdwg.mxu0
    %v122 = vmax.f32 %v114, 0.0
    %v123 = vmax.f32 %v119, 0.0
    %v124 = vld [vmem:[%s3] sm:$0xff]
    %v125 = vld [vmem:[%s3 + $0x8] sm:$0xff]
    %v126 = vld [vmem:[%s3 + $0x10] sm:$0xff]
    %v127 = vld [vmem:[%s3 + $0x18] sm:$0xff]
    %v128 = vld [vmem:[%s3 + $0x20] sm:$0xff]
    %v129 = vld [vmem:[%s3 + $0x28] sm:$0xff]
    %v130 = vld [vmem:[%s3 + $0x30] sm:$0xff]
    %v131 = vld [vmem:[%s3 + $0x38] sm:$0xff]
    %v132 = vld [vmem:[%s3 + $0x40] sm:$0xff]
    %v133 = vld [vmem:[%s3 + $0x48] sm:$0xff]
    %v134 = vld [vmem:[%s3 + $0x50] sm:$0xff]
    %v135 = vld [vmem:[%s3 + $0x58] sm:$0xff]
    %v136 = vld [vmem:[%s3 + $0x60] sm:$0xff]
    %v137 = vld [vmem:[%s3 + $0x68] sm:$0xff]
    %v138 = vld [vmem:[%s3 + $0x70] sm:$0xff]
    %v139 = vld [vmem:[%s3 + $0x78] sm:$0xff]
    %140 = vmatprep.subr.mxu0 0.0
    %141 = vmatpush1.msra.mxu0 %v124
    %142 = vmatprep.subr.mxu0 0.0
    %143 = vmatpush1.msra.mxu0 %v125
    %144 = vmatprep.subr.mxu0 0.0
    %145 = vmatpush1.msra.mxu0 %v126
    %146 = vmatprep.subr.mxu0 0.0
    %147 = vmatpush1.msra.mxu0 %v127
    %148 = vmatprep.subr.mxu0 0.0
    %149 = vmatpush1.msra.mxu0 %v128
    %150 = vmatprep.subr.mxu0 0.0
    %151 = vmatpush1.msra.mxu0 %v129
    %152 = vmatprep.subr.mxu0 0.0
    %153 = vmatpush1.msra.mxu0 %v130
    %154 = vmatprep.subr.mxu0 0.0
    %155 = vmatpush1.msra.mxu0 %v131
    %156 = vmatprep.subr.mxu0 0.0
    %157 = vmatpush1.msra.mxu0 %v132
    %158 = vmatprep.subr.mxu0 0.0
    %159 = vmatpush1.msra.mxu0 %v133
    %160 = vmatprep.subr.mxu0 0.0
    %161 = vmatpush1.msra.mxu0 %v134
    %162 = vmatprep.subr.mxu0 0.0
    %163 = vmatpush1.msra.mxu0 %v135
    %164 = vmatprep.subr.mxu0 0.0
    %165 = vmatpush1.msra.mxu0 %v136
    %166 = vmatprep.subr.mxu0 0.0
    %167 = vmatpush1.msra.mxu0 %v137
    %168 = vmatprep.subr.mxu0 0.0
    %169 = vmatpush1.msra.mxu0 %v138
    %170 = vmatprep.subr.mxu0 0.0
    %171 = vmatpush1.msra.mxu0 %v139
    %172 = vmatprep.subr.mxu0 0.0
    %173 = vmatpush1.msra.mxu0 0.0
    %174 = vmatprep.subr.mxu0 0.0
    %175 = vmatpush1.msra.mxu0 0.0
    %176 = vmatprep.subr.mxu0 0.0
    %177 = vmatpush1.msra.mxu0 0.0
    %178 = vmatprep.subr.mxu0 0.0
    %179 = vmatpush1.msra.mxu0 0.0
    %180 = vmatprep.subr.mxu0 0.0
    %181 = vmatpush1.msra.mxu0 0.0
    %182 = vmatprep.subr.mxu0 0.0
    %183 = vmatpush1.msra.mxu0 0.0
    %184 = vmatprep.subr.mxu0 0.0
    %185 = vmatpush1.msra.mxu0 0.0
    %186 = vmatprep.subr.mxu0 0.0
    %187 = vmatpush1.msra.mxu0 0.0
    %188 = vmatprep.subr.mxu0 0.0
    %189 = vmatpush1.msra.mxu0 0.0
    %190 = vmatprep.subr.mxu0 0.0
    %191 = vmatpush1.msra.mxu0 0.0
    %192 = vmatprep.subr.mxu0 0.0
    %193 = vmatpush1.msra.mxu0 0.0
    %194 = vmatprep.subr.mxu0 0.0
    %195 = vmatpush1.msra.mxu0 0.0
    %196 = vmatprep.subr.mxu0 0.0
    %197 = vmatpush1.msra.mxu0 0.0
    %198 = vmatprep.subr.mxu0 0.0
    %199 = vmatpush1.msra.mxu0 0.0
    %200 = vmatprep.subr.mxu0 0.0
    %201 = vmatpush1.msra.mxu0 0.0
    %202 = vmatprep.subr.mxu0 0.0
    %203 = vmatpush1.msra.mxu0 0.0
    %204 = vmatprep.mubr.f32.mxu0 0.0
    %205 = vmatmul.mubr.f32.gmra.mrb[0].mxu0 %v122
    %v206 = vpop.f32.mrb[0].mxu0
    %v207 = vadd.f32 0.0, %v206
    %v208 = vpop.f32.mrb[0].mxu0
    %209 = vmatprep.mubr.f32.mxu0 0.0
    %210 = vmatmul.mubr.f32.gmra.mrb[0].mxu0 %v123
    %v211 = vpop.f32.mrb[0].mxu0
    %v212 = vadd.f32 0.0, %v211
    %v213 = vpop.f32.mrb[0].mxu0
    %214 = vdwg.mxu0
    %v215 = vadd.f32 %v27, %v207
    %v216 = vadd.f32 %v28, %v212
    %v217 = vld [vmem:[%s4] sm:$0x1]
    %v219 = vlaneseq
    %v220 = vshrl.u32 %v219, 7
    %v221 = vsub.s32 0, %v220
    %v222 = vrot.slane %v217, %v221
    %v224 = vadd.f32 %v215, %v222
    %v225 = vadd.f32 %v216, %v222
    %v226 = vsel %vm40, %v224, 0.0
    %227 = vadd.xlane.f32.xlu0 %v226
    %v228 = vpop.xlane.xlu0 %227
    %v229 = vsel %vm40, %v225, 0.0
    %230 = vadd.xlane.f32.xlu0 %v229
    %v231 = vpop.xlane.xlu0 %230
    %v232 = vrcp.pop 32.0
    %v233 = vmul.f32 %v228, %v232
    %v234 = vmul.f32 %v231, %v232
    %v235 = vmul.f32 %v224, %v224
    %v236 = vmul.f32 %v225, %v225
    %v237 = vsel %vm40, %v235, 0.0
    %238 = vadd.xlane.f32.xlu0 %v237
    %v239 = vpop.xlane.xlu0 %238
    %v240 = vsel %vm40, %v236, 0.0
    %241 = vadd.xlane.f32.xlu0 %v240
    %v242 = vpop.xlane.xlu0 %241
    %v243 = vmul.f32 %v239, %v232
    %v244 = vmul.f32 %v242, %v232
    %v245 = vmul.f32 %v233, %v233
    %v246 = vmul.f32 %v234, %v234
    %v247 = vsub.f32 %v243, %v245
    %v248 = vsub.f32 %v244, %v246
    %v249 = vadd.f32 %v247, 1e-05
    %v250 = vadd.f32 %v248, 1e-05
    %v251 = vrsqrt.pop %v249
    %v252 = vrsqrt.pop %v250
    %v253 = vsub.f32 %v224, %v233
    %v254 = vsub.f32 %v225, %v234
    %v255 = vmul.f32 %v253, %v251
    %v256 = vmul.f32 %v254, %v252
    %v257 = vld [vmem:[%s5] sm:$0x1]
    %v259 = vlaneseq
    %v260 = vshrl.u32 %v259, 7
    %v261 = vsub.s32 0, %v260
    %v262 = vrot.slane %v257, %v261
    %v264 = vmul.f32 %v255, %v262
    %v265 = vmul.f32 %v256, %v262
    %v266 = vld [vmem:[%s6] sm:$0x1]
    %v268 = vlaneseq
    %v269 = vshrl.u32 %v268, 7
    %v270 = vsub.s32 0, %v269
    %v271 = vrot.slane %v266, %v270
    %v273 = vadd.f32 %v264, %v271
    %v274 = vadd.f32 %v265, %v271
    %275 = vst.msk [vmem:[#allocation2] sm:$0xff] %vm40, %v273
    %276 = vst.msk [vmem:[#allocation2 + $0x8] sm:$0xff] %vm40, %v274
    // Predicated region
    $region30: #{tpu_custom_call.1} parent=1 // pred_check
      _
    $region31: #{tpu_custom_call.1} parent=1 // pred_check_branch
      %278 = sbr.rel (0) target = $region33
    $region32: #{tpu_custom_call.1} parent=1 // pred_region
      %s280 = ssub.s32 256, 256
      %281 = vsyncadd [#allocation3], %s280
      %s282 = sshll.u32 [#allocation2], 4
      %s283 = int_to_ptr.vmem [resolvable:$true] %s282
      %288 = dma.vmem_to_hbm [thread:$0]  %s283, 256, %s7, [#allocation3], 128, 128, 8
    $region33: #{tpu_custom_call.1} parent=1 // pred_fallthru
      _
    // Predicated region
    $region34: #{tpu_custom_call.1} parent=1 // pred_check
      _
    $region35: #{tpu_custom_call.1} parent=1 // pred_check_branch
      %290 = sbr.rel (0) target = $region37
    $region36: #{tpu_custom_call.1} parent=1 // pred_region
      %291 = dma.done [#allocation3], 256
    $region37: #{tpu_custom_call.1} parent=1 // pred_fallthru
      _
    %292 = vsyncpa [#allocation3], 1

</llo_original>
